<compile_context>
chip_gen: v7x
topology: tpu7x:2x2x1
jax: 0.10.0
libtpu: 0.0.40
codegen_flags: <defaults>
</compile_context>

<pallas_src>
import functools

import jax
import jax.numpy as jnp
from jax.experimental import pallas as pl
from jax.experimental.pallas import tpu as pltpu

_CLAMP_MIN = 1e-12
_CLAMP_MAX = 1e12


def _center_loss_kernel(x_ref, labels_ref, c_hbm_ref, out_ref,
                        c_vmem_ref, acc_ref, c_sem,
                        *, batch, num_classes, block_b, mask_tail):
    # x_ref:      (tb, D)  native dtype, VMEM (current batch tile)
    # labels_ref: (tb, 1)  int32, VMEM (current label tile)
    # c_hbm_ref:  (C, D)   centers, left in HBM (pl.ANY)
    # out_ref:    (1, 1)   float32, SMEM (scalar loss)
    # c_vmem_ref: (C, D)   VMEM scratch, resident single-buffered centers
    # acc_ref:    (tb, 1)  float32 VMEM scratch, vector loss accumulator
    # c_sem:      DMA semaphore for the one-time centers load
    i = pl.program_id(0)

    @pl.when(i == 0)
    def _init():
        # One-time DMA of the class centers; they stay resident (single-buffered)
        # in VMEM for the rest of the grid.
        cp = pltpu.make_async_copy(c_hbm_ref, c_vmem_ref, c_sem)
        cp.start()
        cp.wait()
        acc_ref[...] = jnp.zeros_like(acc_ref)

    c = c_vmem_ref[...]                                   # (C, D)
    x = x_ref[...].astype(jnp.float32)                    # (tb, D), cast in VMEM
    labels = labels_ref[...]                              # (tb, 1) int32

    # One-hot gather of the labeled centers on the MXU (replaces the rolled
    # per-row copy loop).  For best MXU utilization tb/C should be multiples of
    # 256 (v6e/v7x) or 128 (v5e); the compiler pads smaller shapes.
    class_ids = jax.lax.broadcasted_iota(jnp.int32, (block_b, num_classes), 1)
    onehot = (labels == class_ids).astype(c.dtype)                    # (tb, C)
    cg = jnp.dot(onehot, c, preferred_element_type=jnp.float32)       # (tb, D)

    # Per-row squared distance to the labeled center.
    diff = x - cg
    d = jnp.sum(diff * diff, axis=1, keepdims=True)                   # (tb, 1)
    d = jnp.clip(d, _CLAMP_MIN, _CLAMP_MAX)

    if mask_tail:
        # Only emitted when B is not a multiple of tb: zero padded rows of the
        # last tile (their VMEM contents are stale / undefined).
        row_ids = i * block_b + jax.lax.broadcasted_iota(
            jnp.int32, (block_b, 1), 0)
        d = jnp.where(row_ids < batch, d, 0.0)

    acc_ref[...] += d

    @pl.when(i == pl.num_programs(0) - 1)
    def _finalize():
        # PyTorch clamps AFTER masking: each row's (C-1) masked-out zeros are
        # clamped up to 1e-12 before the global sum -> analytic bias.
        bias = batch * (num_classes - 1) * _CLAMP_MIN
        out_ref[0, 0] = (jnp.sum(acc_ref[...]) + bias) * (1.0 / batch)


def center_loss(x: jax.Array, labels: jax.Array, centers: jax.Array,
                *, block_rows: int | None = None) -> jax.Array:
    """Pallas CenterLoss forward.

    Args:
      x:       (B, D) features (f32 or bf16; streamed in native dtype)
      labels:  (B,)   integer class labels
      centers: (C, D) class centers (the nn.Parameter)

    Returns:
      scalar float32 loss matching the PyTorch module's forward.
    """
    B, D = x.shape
    C, D2 = centers.shape
    assert D == D2, "feature dims of x and centers must match"

    x_itemsize = jnp.dtype(x.dtype).itemsize
    c_itemsize = jnp.dtype(centers.dtype).itemsize
    # Sublane alignment: 8 for 4-byte dtypes, 16 for bf16, 32 for 1-byte dtypes.
    sublane = max(8, 32 // x_itemsize)

    # Batch tile: aim for ~1 MiB of x per tile (mem-bound roofline), capped.
    if block_rows is None:
        block_rows = max(sublane, min(2048, (1 << 20) // max(1, D * x_itemsize)))
    if B <= block_rows:
        tb = B                                   # single tile, no alignment needed
    else:
        tb = max(sublane, (block_rows // sublane) * sublane)
    num_tiles = pl.cdiv(B, tb)
    mask_tail = (B % tb) != 0

    labels2d = labels.astype(jnp.int32).reshape(B, 1)

    kernel = functools.partial(
        _center_loss_kernel, batch=B, num_classes=C, block_b=tb,
        mask_tail=mask_tail)

    # Explicit VMEM budget: double-buffered x/label tiles + resident centers
    # (single-buffered scratch) + accumulator, with headroom.
    vmem_needed = (2 * tb * D * x_itemsize          # x tiles (double-buffered)
                   + 2 * tb * 4                     # label tiles
                   + C * max(D, 128) * c_itemsize   # resident centers (lane-padded)
                   + tb * 128 * 4)                  # accumulator + slack
    vmem_limit = int(min(100 * 2**20, max(2 * vmem_needed, 16 * 2**20)))

    grid_spec = pltpu.PrefetchScalarGridSpec(
        num_scalar_prefetch=0,
        grid=(num_tiles,),
        in_specs=[
            pl.BlockSpec((tb, D), lambda i: (i, 0)),   # x tile, native dtype
            pl.BlockSpec((tb, 1), lambda i: (i, 0)),   # label tile
            pl.BlockSpec(memory_space=pl.ANY),         # centers stay in HBM
        ],
        out_specs=pl.BlockSpec(memory_space=pltpu.MemorySpace.SMEM),
        scratch_shapes=[
            pltpu.VMEM((C, D), centers.dtype),         # resident centers (1 buffer)
            pltpu.VMEM((tb, 1), jnp.float32),          # vector loss accumulator
            pltpu.SemaphoreType.DMA,                   # centers-load semaphore
        ],
    )

    out = pl.pallas_call(
        kernel,
        out_shape=jax.ShapeDtypeStruct((1, 1), jnp.float32),
        grid_spec=grid_spec,
        compiler_params=pltpu.CompilerParams(
            # The single grid axis carries the running accumulation -> reduction.
            dimension_semantics=("arbitrary",),
            vmem_limit_bytes=vmem_limit,
        ),
    )(x, labels2d, centers)
    return out[0, 0]


if __name__ == "__main__":
    # Small shapes consistent with the module: CenterLoss(num_classes=16, feat_dim=32).
    num_classes = 16
    feat_dim = 32
    batch = 8

    key = jax.random.PRNGKey(0)
    k_centers, k_x, k_lab = jax.random.split(key, 3)

    # Deterministic "parameter" init (torch.randn equivalent).
    centers = jax.random.normal(k_centers, (num_classes, feat_dim), dtype=jnp.float32)
    x = jax.random.normal(k_x, (batch, feat_dim), dtype=jnp.float32)
    labels = jax.random.randint(k_lab, (batch,), 0, num_classes, dtype=jnp.int32)

    loss = center_loss(x, labels, centers)
    loss = jax.block_until_ready(loss)

    # Pure-JAX reference of the exact PyTorch semantics (full distmat + mask + clamp).
    x2 = jnp.sum(x ** 2, axis=1, keepdims=True)
    c2 = jnp.sum(centers ** 2, axis=1, keepdims=True)
    distmat = x2 + c2.T - 2.0 * (x @ centers.T)
    mask = (labels[:, None] == jnp.arange(num_classes)[None, :]).astype(jnp.float32)
    ref = jnp.sum(jnp.clip(distmat * mask, 1e-12, 1e12)) / batch

    assert jnp.allclose(loss, ref, rtol=1e-5, atol=1e-5), (loss, ref)
    print("KERNEL_OK")
</pallas_src>

<mosaic_0001>
module attributes {stable_mosaic.version = 11 : i64} {
  func.func @_center_loss_kernel(%arg0: i32, %arg1: memref<8x32xf32, #tpu.memory_space<vmem>>, %arg2: memref<8x1xi32, #tpu.memory_space<vmem>>, %arg3: memref<16x32xf32, #tpu.memory_space<any>>, %arg4: memref<1x1xf32, #tpu.memory_space<smem>>, %arg5: memref<16x32xf32, #tpu.memory_space<vmem>>, %arg6: memref<8x1xf32, #tpu.memory_space<vmem>>, %arg7: memref<!tpu.dma_semaphore, #tpu.memory_space<semaphore_mem>>) attributes {dimension_semantics = [#tpu.dimension_semantics<arbitrary>], iteration_bounds = array<i64: 1>, scalar_prefetch = 0 : i64, scratch_operands = 3 : i64, tpu.core_type = #tpu.core_type<tc>, window_params = [{transform_indices = @transform_0, window_bounds = array<i64: 8, 32>}, {transform_indices = @transform_1, window_bounds = array<i64: 8, 1>}, {}, {transform_indices = @transform_3, window_bounds = array<i64: 1, 1>}]} {
    %c0_i32 = arith.constant 0 : i32
    %0 = arith.cmpi eq, %arg0, %c0_i32 : i32
    %1 = arith.extui %0 : i1 to i32
    %c0_i32_0 = arith.constant 0 : i32
    %2 = arith.cmpi ne, %1, %c0_i32_0 : i32
    scf.if %2 {
      tpu.enqueue_dma source(%arg3 : memref<16x32xf32, #tpu.memory_space<any>>) target(%arg5 : memref<16x32xf32, #tpu.memory_space<vmem>>) target_semaphore(%arg7 : memref<!tpu.dma_semaphore, #tpu.memory_space<semaphore_mem>>)
      tpu.wait_dma2 semaphore(%arg7 : memref<!tpu.dma_semaphore, #tpu.memory_space<semaphore_mem>>) src(%arg3 : memref<16x32xf32, #tpu.memory_space<any>>) dst(%arg5 : memref<16x32xf32, #tpu.memory_space<vmem>>)
      %cst_15 = arith.constant 0.000000e+00 : f32
      %26 = vector.broadcast %cst_15 : f32 to vector<8x1xf32>
      %c0_16 = arith.constant 0 : index
      %c0_17 = arith.constant 0 : index
      %27 = vector.load %arg6[%c0_16, %c0_17] : memref<8x1xf32, #tpu.memory_space<vmem>>, vector<8x1xf32>
      tpu.vector_store %arg6[%c0_16, %c0_17], %26 {strides = array<i32>} : memref<8x1xf32, #tpu.memory_space<vmem>>, vector<8x1xf32>,
    } else {
    }
    %c0 = arith.constant 0 : index
    %c0_1 = arith.constant 0 : index
    %3 = vector.load %arg5[%c0, %c0_1] : memref<16x32xf32, #tpu.memory_space<vmem>>, vector<16x32xf32>
    %c0_2 = arith.constant 0 : index
    %c0_3 = arith.constant 0 : index
    %4 = vector.load %arg1[%c0_2, %c0_3] : memref<8x32xf32, #tpu.memory_space<vmem>>, vector<8x32xf32>
    %c0_4 = arith.constant 0 : index
    %c0_5 = arith.constant 0 : index
    %5 = vector.load %arg2[%c0_4, %c0_5] : memref<8x1xi32, #tpu.memory_space<vmem>>, vector<8x1xi32>
    %6 = tpu.iota {dimensions = array<i32: 1>} : vector<8x16xi32>
    %7 = vector.broadcast %5 : vector<8x1xi32> to vector<8x16xi32>
    %8 = arith.cmpi eq, %7, %6 : vector<8x16xi32>
    %9 = arith.extui %8 : vector<8x16xi1> to vector<8x16xi32>
    %10 = arith.sitofp %9 : vector<8x16xi32> to vector<8x16xf32>
    %cst = arith.constant dense<0.000000e+00> : vector<8x32xf32>
    %11 = tpu.matmul %10, %3, %cst {dimension_numbers = #tpu.dot_dimension_numbers<[1], [0], [0], [1], [0, 0, 1, 1], [], []>} : vector<8x16xf32>, vector<16x32xf32>, vector<8x32xf32> -> vector<8x32xf32>
    %12 = arith.subf %4, %11 : vector<8x32xf32>
    %13 = arith.mulf %12, %12 : vector<8x32xf32>
    %cst_6 = arith.constant dense<0.000000e+00> : vector<8xf32>
    %14 = vector.multi_reduction <add>, %13, %cst_6 [1] : vector<8x32xf32> to vector<8xf32>
    %15 = vector.shape_cast %14 : vector<8xf32> to vector<8x1xf32>
    %cst_7 = arith.constant 9.99999996E-13 : f32
    %cst_8 = arith.constant 9.99999995E+11 : f32
    %16 = vector.broadcast %cst_7 : f32 to vector<8x1xf32>
    %17 = arith.maximumf %16, %15 : vector<8x1xf32>
    %18 = vector.broadcast %cst_8 : f32 to vector<8x1xf32>
    %19 = arith.minimumf %18, %17 : vector<8x1xf32>
    %c0_9 = arith.constant 0 : index
    %c0_10 = arith.constant 0 : index
    %20 = vector.load %arg6[%c0_9, %c0_10] : memref<8x1xf32, #tpu.memory_space<vmem>>, vector<8x1xf32>
    %21 = arith.addf %20, %19 : vector<8x1xf32>
    %c0_11 = arith.constant 0 : index
    %c0_12 = arith.constant 0 : index
    %22 = vector.load %arg6[%c0_11, %c0_12] : memref<8x1xf32, #tpu.memory_space<vmem>>, vector<8x1xf32>
    tpu.vector_store %arg6[%c0_11, %c0_12], %21 {strides = array<i32>} : memref<8x1xf32, #tpu.memory_space<vmem>>, vector<8x1xf32>,
    %c0_i32_13 = arith.constant 0 : i32
    %23 = arith.cmpi eq, %arg0, %c0_i32_13 : i32
    %24 = arith.extui %23 : i1 to i32
    %c0_i32_14 = arith.constant 0 : i32
    %25 = arith.cmpi ne, %24, %c0_i32_14 : i32
    scf.if %25 {
      %c0_15 = arith.constant 0 : index
      %c0_16 = arith.constant 0 : index
      %26 = vector.load %arg6[%c0_15, %c0_16] : memref<8x1xf32, #tpu.memory_space<vmem>>, vector<8x1xf32>
      %27 = vector.shape_cast %26 : vector<8x1xf32> to vector<1x8x1xf32>
      %cst_17 = arith.constant dense<0.000000e+00> : vector<1xf32>
      %28 = vector.multi_reduction <add>, %27, %cst_17 [1, 2] : vector<1x8x1xf32> to vector<1xf32>
      %29 = vector.shape_cast %28 : vector<1xf32> to vector<1x1x1xf32>
      %30 = vector.extract %29[0, 0, 0] : f32 from vector<1x1x1xf32>
      %cst_18 = arith.constant 1.200000e-10 : f32
      %31 = arith.addf %30, %cst_18 : f32
      %cst_19 = arith.constant 1.250000e-01 : f32
      %32 = arith.mulf %31, %cst_19 : f32
      %c0_20 = arith.constant 0 : index
      %c0_21 = arith.constant 0 : index
      %33 = memref.load %arg4[%c0_20, %c0_21] : memref<1x1xf32, #tpu.memory_space<smem>>
      memref.store %32, %arg4[%c0_20, %c0_21] : memref<1x1xf32, #tpu.memory_space<smem>>
    } else {
    }
    return
  }
  func.func @transform_0(%arg0: i32) -> (i32, i32) {
    %c0_i32 = arith.constant 0 : i32
    %c0_i32_0 = arith.constant 0 : i32
    return %arg0, %c0_i32 : i32, i32
  }
  func.func @transform_1(%arg0: i32) -> (i32, i32) {
    %c0_i32 = arith.constant 0 : i32
    %c0_i32_0 = arith.constant 0 : i32
    return %arg0, %c0_i32 : i32, i32
  }
  func.func @transform_3(%arg0: i32) -> (i32, i32) {
    %c0_i32 = arith.constant 0 : i32
    %c0_i32_0 = arith.constant 0 : i32
    %c0_i32_1 = arith.constant 0 : i32
    return %c0_i32, %c0_i32_0 : i32, i32
  }
}

</mosaic_0001>

<llo_original>
// kernel: tpu_custom_call.1
$region0: #{tpu_custom_call.1}
  #allocation0 [shape = 'u32[]', space=smem, size = 0x4, offset = 0x4, fixed_abs, tag = 'smem constant byte address 0x4 - core index']
  #allocation1 [shape = 'u32[144,128]{1,0:T(1,128)}', space=vmem, size = 0x12000, scoped, tag = 'internal scratch']
  #allocation2 [shape = 'f32[16,32]{1,0:T(8,128)}', space=vmem, size = 0x2000, scoped, tag = 'scratch operand']
  #allocation3 [shape = 'f32[8,1]{1,0:T(8,128)}', space=vmem, size = 0x1000, scoped, tag = 'scratch operand']
  #allocation4 [shape = 's32[1]{0}', space=sflag, size = 0x4, scoped, tag = 'scratch operand']
  #allocation9 [shape = 's32[]', space=sflag, size = 0x4, offset = 0, fixed_abs, tag = 'sflag constant byte address 0x0 - dummy sync flag']
  %s0 = inlined_call_operand.hbm [shape: f32[8,32], index: 0, kind: input, shape index: {}]
  %s1 = inlined_call_operand.vmem [shape: s32[8,1], index: 1, kind: input, shape index: {}]
  %s2 = inlined_call_operand.vmem [shape: f32[16,32], index: 2, kind: input, shape index: {}]
  %s3 = inlined_call_operand.hbm [shape: f32[1,1], index: 3, kind: output, shape index: {}]
  %s4 = sld [smem:[#allocation0]]
  $region64: #{tpu_custom_call.1} parent=0
    _
  %s6 = ssub.s32 1, %s4
  %s7 = scalar_select 0, %s6, %s4
  $region1: #{tpu_custom_call.1} parent=0
    #allocation5 [shape = 'u8[4096]{0}', space=vmem, size = 0x1000, scoped, tag = 'input window, operand 0, single buffered']
    #allocation6 [shape = 's32[1]{0}', space=sflag, size = 0x4, scoped, tag = 'scoped memory for tpu_custom_call.1']
    #allocation7 [shape = 's32[1]{0}', space=sflag, size = 0x4, scoped, tag = 'scoped memory for tpu_custom_call.1']
    #allocation8 [shape = 'u8[512]{0}', space=smem, size = 0x200, scoped, tag = 'output window, operand 0, single buffered']
    %8 = vsyncpa [#allocation6], 0
    %9 = vsyncpa [#allocation7], 0
    // Predicated region
    $region2: #{tpu_custom_call.1} parent=1 // pred_check
      _
    $region3: #{tpu_custom_call.1} parent=1 // pred_check_branch
      %11 = sbr.rel (0) target = $region5
    $region4: #{tpu_custom_call.1} parent=1 // pred_region
      %s13 = ssub.s32 128, 128
      %14 = vsyncadd [#allocation6], %s13
      %s16 = sshll.u32 [#allocation5], 4
      %s17 = int_to_ptr.vmem [resolvable:$true] %s16
      %19 = dma.hbm_to_vmem [thread:$0]  %s0, 128, %s17, [#allocation6]
    $region5: #{tpu_custom_call.1} parent=1 // pred_fallthru
      _
    // Predicated region
    $region6: #{tpu_custom_call.1} parent=1 // pred_check
      _
    $region7: #{tpu_custom_call.1} parent=1 // pred_check_branch
      %21 = sbr.rel (0) target = $region9
    $region8: #{tpu_custom_call.1} parent=1 // pred_region
      _
    $region9: #{tpu_custom_call.1} parent=1 // pred_fallthru
      _
    // Predicated region
    $region10: #{tpu_custom_call.1} parent=1 // pred_check
      _
    $region11: #{tpu_custom_call.1} parent=1 // pred_check_branch
      %23 = sbr.rel (0) target = $region13
    $region12: #{tpu_custom_call.1} parent=1 // pred_region
      %24 = dma.done [#allocation6], 128
    $region13: #{tpu_custom_call.1} parent=1 // pred_fallthru
      _
    %p25 = scmp.eq.s32.totalorder 0, 0
    // Predicated region
    $region14: #{tpu_custom_call.1} parent=1 // pred_check
      %p26 = pneg %p25
    $region15: #{tpu_custom_call.1} parent=1 // pred_check_branch
      %28 = sbr.rel (%p26) target = $region17
    $region16: #{tpu_custom_call.1} parent=1 // pred_region
      %p30 = scmp.lt.u32.totalorder 16, 8
      %p31 = pneg %p30
      // Predicated region
      $region18: #{tpu_custom_call.1} parent=16 // pred_check
        _
      $region19: #{tpu_custom_call.1} parent=16 // pred_check_branch
        %33 = sbr.rel (%p30) target = $region21
      $region20: #{tpu_custom_call.1} parent=16 // pred_region
        %s48 = sand.u32 16, 7
        %p49 = scmp.eq.s32.totalorder %s48, 0
        // Predicated region
        $region33: #{tpu_custom_call.1} parent=20 // pred_check
          %p50 = pneg %p49
        $region34: #{tpu_custom_call.1} parent=20 // pred_check_branch
          %52 = sbr.rel (%p50) target = $region36
        $region35: #{tpu_custom_call.1} parent=20 // pred_region
          loop: start=0, step=1, limit=1
          $region37: #{tpu_custom_call.1} parent=35 // loop_pre_header
            _
          $region38: #{tpu_custom_call.1} parent=35 // loop_header
            %s54 = sphi 0, %s58
            %p55 = scmp.ge.s32.totalorder %s54, 1
            %s59 = sphi %s2, %s2
            %s60 = sphi [#allocation2], [#allocation2]
          $region39: #{tpu_custom_call.1} parent=35 // loop_header_branch
            %57 = sbr.rel (%p55) target = $region43
          $region40: #{tpu_custom_call.1} parent=35 // loop_body
            %v61 = vld [vmem:[%s59] sm:$0xff]
            %62 = vst [vmem:[%s60] sm:$0xff] %v61
            %v63 = vld [vmem:[%s59 + $0x8] sm:$0xff]
            %64 = vst [vmem:[%s60 + $0x8] sm:$0xff] %v63
          $region41: #{tpu_custom_call.1} parent=35 // loop_footer
            %s58 = sadd.s32 1, %s54
          $region42: #{tpu_custom_call.1} parent=35 // loop_footer_branch
            %53 = sbr.rel target = $region38
          $region43: #{tpu_custom_call.1} parent=35 // loop_exit
            _
        $region36: #{tpu_custom_call.1} parent=20 // pred_fallthru
          _
        %p65 = pneg %p49
        // Predicated region
        $region44: #{tpu_custom_call.1} parent=20 // pred_check
          _
        $region45: #{tpu_custom_call.1} parent=20 // pred_check_branch
          %67 = sbr.rel (%p49) target = $region47
        $region46: #{tpu_custom_call.1} parent=20 // pred_region
          %s68 = sand.u32 16, 7
        $region47: #{tpu_custom_call.1} parent=20 // pred_fallthru
          _
      $region21: #{tpu_custom_call.1} parent=16 // pred_fallthru
        _
      // Predicated region
      $region22: #{tpu_custom_call.1} parent=16 // pred_check
        %p34 = pneg %p30
      $region23: #{tpu_custom_call.1} parent=16 // pred_check_branch
        %36 = sbr.rel (%p34) target = $region25
      $region24: #{tpu_custom_call.1} parent=16 // pred_region
        %s37 = sshllo.u32 0, 16
        loop: start=0, step=1, limit=1
        $region26: #{tpu_custom_call.1} parent=24 // loop_pre_header
          _
        $region27: #{tpu_custom_call.1} parent=24 // loop_header
          %s39 = sphi 0, %s43
          %p40 = scmp.ge.s32.totalorder %s39, 1
          %s44 = sphi %s2, %s2
          %s45 = sphi [#allocation2], [#allocation2]
        $region28: #{tpu_custom_call.1} parent=24 // loop_header_branch
          %42 = sbr.rel (%p40) target = $region32
        $region29: #{tpu_custom_call.1} parent=24 // loop_body
          %v46 = vld [vmem:[%s44] sm:%s37]
          %47 = vst [vmem:[%s45] sm:%s37] %v46
        $region30: #{tpu_custom_call.1} parent=24 // loop_footer
          %s43 = sadd.s32 1, %s39
        $region31: #{tpu_custom_call.1} parent=24 // loop_footer_branch
          %38 = sbr.rel target = $region27
        $region32: #{tpu_custom_call.1} parent=24 // loop_exit
          _
      $region25: #{tpu_custom_call.1} parent=16 // pred_fallthru
        _
      // Predicated region
      $region48: #{tpu_custom_call.1} parent=16 // pred_check
        _
      $region49: #{tpu_custom_call.1} parent=16 // pred_check_branch
        %71 = sbr.rel (0) target = $region51
      $region50: #{tpu_custom_call.1} parent=16 // pred_region
        %72 = vsyncadd [#allocation4], 256
      $region51: #{tpu_custom_call.1} parent=16 // pred_fallthru
        _
      %s73 = smul.u32 16, 1
      %s74 = sshll.u32 %s73, 4
      %75 = dma.done [#allocation4], %s74
      %vm76 = vcmask 7168
      %77 = vst.msk [vmem:[#allocation3] sm:$0xff] %vm76, 0.0
    $region17: #{tpu_custom_call.1} parent=1 // pred_fallthru
      _
    %v78 = vld [vmem:[#allocation2] sm:$0xff]
    %v79 = vld [vmem:[#allocation2 + $0x8] sm:$0xff]
    %v80 = vld [vmem:[#allocation5] sm:$0xff]
    %v81 = vld [vmem:[%s1] sm:$0xff]
    %v82 = vlaneseq
    %v83 = vand.u32 %v82, 127
    %84 = vset.pattern.permute.xlu0 0
    %85 = vperm.xlu0 %84, %v81
    %v86 = vpop.permute.xlu0 %85
    %vm87 = vcmp.eq.s32.totalorder %v86, %v83
    %v88 = vsel %vm87, 1, 0
    %v89 = vcvt.s32.f32 %v88
    %vm90 = vcmask 130048
    %v92 = vsel %vm90, %v89, 0
    %94 = vmatprep.subr.mxu0 0.0
    %95 = vmatpush1.msra.mxu0 %v78
    %96 = vmatprep.subr.mxu0 0.0
    %97 = vmatpush1.msra.mxu0 %v79
    %98 = vmatprep.subr.mxu0 0.0
    %99 = vmatpush1.msra.mxu0 0.0
    %100 = vmatprep.subr.mxu0 0.0
    %101 = vmatpush1.msra.mxu0 0.0
    %102 = vmatprep.subr.mxu0 0.0
    %103 = vmatpush1.msra.mxu0 0.0
    %104 = vmatprep.subr.mxu0 0.0
    %105 = vmatpush1.msra.mxu0 0.0
    %106 = vmatprep.subr.mxu0 0.0
    %107 = vmatpush1.msra.mxu0 0.0
    %108 = vmatprep.subr.mxu0 0.0
    %109 = vmatpush1.msra.mxu0 0.0
    %110 = vmatprep.subr.mxu0 0.0
    %111 = vmatpush1.msra.mxu0 0.0
    %112 = vmatprep.subr.mxu0 0.0
    %113 = vmatpush1.msra.mxu0 0.0
    %114 = vmatprep.subr.mxu0 0.0
    %115 = vmatpush1.msra.mxu0 0.0
    %116 = vmatprep.subr.mxu0 0.0
    %117 = vmatpush1.msra.mxu0 0.0
    %118 = vmatprep.subr.mxu0 0.0
    %119 = vmatpush1.msra.mxu0 0.0
    %120 = vmatprep.subr.mxu0 0.0
    %121 = vmatpush1.msra.mxu0 0.0
    %122 = vmatprep.subr.mxu0 0.0
    %123 = vmatpush1.msra.mxu0 0.0
    %124 = vmatprep.subr.mxu0 0.0
    %125 = vmatpush1.msra.mxu0 0.0
    %126 = vmatprep.subr.mxu0 0.0
    %127 = vmatpush1.msra.mxu0 0.0
    %128 = vmatprep.subr.mxu0 0.0
    %129 = vmatpush1.msra.mxu0 0.0
    %130 = vmatprep.subr.mxu0 0.0
    %131 = vmatpush1.msra.mxu0 0.0
    %132 = vmatprep.subr.mxu0 0.0
    %133 = vmatpush1.msra.mxu0 0.0
    %134 = vmatprep.subr.mxu0 0.0
    %135 = vmatpush1.msra.mxu0 0.0
    %136 = vmatprep.subr.mxu0 0.0
    %137 = vmatpush1.msra.mxu0 0.0
    %138 = vmatprep.subr.mxu0 0.0
    %139 = vmatpush1.msra.mxu0 0.0
    %140 = vmatprep.subr.mxu0 0.0
    %141 = vmatpush1.msra.mxu0 0.0
    %142 = vmatprep.subr.mxu0 0.0
    %143 = vmatpush1.msra.mxu0 0.0
    %144 = vmatprep.subr.mxu0 0.0
    %145 = vmatpush1.msra.mxu0 0.0
    %146 = vmatprep.subr.mxu0 0.0
    %147 = vmatpush1.msra.mxu0 0.0
    %148 = vmatprep.subr.mxu0 0.0
    %149 = vmatpush1.msra.mxu0 0.0
    %150 = vmatprep.subr.mxu0 0.0
    %151 = vmatpush1.msra.mxu0 0.0
    %152 = vmatprep.subr.mxu0 0.0
    %153 = vmatpush1.msra.mxu0 0.0
    %154 = vmatprep.subr.mxu0 0.0
    %155 = vmatpush1.msra.mxu0 0.0
    %156 = vmatprep.subr.mxu0 0.0
    %157 = vmatpush1.msra.mxu0 0.0
    %158 = vmatprep.mubr.f32.mxu0 0.0
    %159 = vmatmul.mubr.f32.gmra.mrb[0].mxu0 %v92
    %v160 = vpop.f32.mrb[0].mxu0
    %v161 = vadd.f32 0.0, %v160
    %v162 = vpop.f32.mrb[0].mxu0
    %163 = vdwg.mxu0
    %v164 = vsub.f32 %v80, %v161
    %v165 = vmul.f32 %v164, %v164
    %vm166 = vcmask 261120
    %v167 = vsel %vm166, %v165, 0.0
    %168 = vadd.xlane.f32.xlu0 %v167
    %v169 = vpop.xlane.xlu0 %168
    %v170 = vmax.f32 %v169, 1e-12
    %v171 = vmin.f32 %v170, 1e+12
    %v172 = vld [vmem:[#allocation3] sm:$0xff]
    %v173 = vadd.f32 %v172, %v171
    %vm174 = vcmask 7168
    %175 = vst.msk [vmem:[#allocation3] sm:$0xff] %vm174, %v173
    // Predicated region
    $region52: #{tpu_custom_call.1} parent=1 // pred_check
      %p176 = pneg %p25
    $region53: #{tpu_custom_call.1} parent=1 // pred_check_branch
      %178 = sbr.rel (%p176) target = $region55
    $region54: #{tpu_custom_call.1} parent=1 // pred_region
      %v179 = vld [vmem:[#allocation3] sm:$0xff]
      %v180 = vsel %vm174, %v179, 0.0
      %181 = vadd.xlane.f32.xlu0 %v180
      %v182 = vpop.xlane.xlu0 %181
      %v183 = vrot.slane %v182, 4
      %v184 = vadd.f32 %v182, %v183
      %v185 = vrot.slane %v184, 2
      %v186 = vadd.f32 %v184, %v185
      %v187 = vrot.slane %v186, 1
      %v188 = vadd.f32 %v186, %v187
      %s189 = vtos %v188
      %s190 = sadd.f32 %s189, 1.2e-10
      %s191 = smul.f32 %s190, 0.125
      %s192 = scalar_lea.smem [#allocation8], 0
      %193 = sst [smem:[%s192]] %s191
    $region55: #{tpu_custom_call.1} parent=1 // pred_fallthru
      _
    // Predicated region
    $region56: #{tpu_custom_call.1} parent=1 // pred_check
      _
    $region57: #{tpu_custom_call.1} parent=1 // pred_check_branch
      %195 = sbr.rel (0) target = $region59
    $region58: #{tpu_custom_call.1} parent=1 // pred_region
      %s197 = ssub.s32 16, 16
      %198 = vsyncadd [#allocation7], %s197
      %201 = dma.smem_to_hbm [#allocation8], 16, %s3, [#allocation7]
    $region59: #{tpu_custom_call.1} parent=1 // pred_fallthru
      _
    // Predicated region
    $region60: #{tpu_custom_call.1} parent=1 // pred_check
      _
    $region61: #{tpu_custom_call.1} parent=1 // pred_check_branch
      %203 = sbr.rel (0) target = $region63
    $region62: #{tpu_custom_call.1} parent=1 // pred_region
      %204 = dma.done [#allocation7], 16
    $region63: #{tpu_custom_call.1} parent=1 // pred_fallthru
      _
    %205 = sfence
    %206 = vsyncpa [#allocation6], 1
    %207 = vsyncpa [#allocation7], 1
  %208 = vsyncmov [#allocation4]
  %s209 = vpop.sfrf %208
  %p210 = scmp.eq.s32.totalorder %s209, 0
  %p211 = pneg %p210
  %213 = shalt.err (%p211)

</llo_original>
